<compile_context>
chip_gen: v7x
topology: tpu7x:2x2x1
jax: 0.10.0
libtpu: 0.0.40
codegen_flags: <defaults>
</compile_context>

<pallas_src>
import jax
import jax.numpy as jnp
from jax import lax
from jax.experimental import pallas as pl
from jax.experimental.pallas import tpu as pltpu


def _round_up(x, m):
    return ((x + m - 1) // m) * m


def _mlp_kernel(x_ref, w1_ref, b1_ref, w2_ref, b2_ref, w3_ref, b3_ref, o_ref):
    # x_ref: (TILE_B, F). Weight/bias refs are VMEM-resident across grid steps.
    x = x_ref[...]

    # fc1 + ReLU   (dropout1 = identity at inference)
    h1 = (jnp.dot(x, w1_ref[...], preferred_element_type=jnp.float32)
          + b1_ref[...].astype(jnp.float32))
    h1 = jnp.maximum(h1, 0.0)

    # fc2 + ReLU   (dropout2 = identity at inference)
    h2 = (jnp.dot(h1, w2_ref[...].astype(jnp.float32),
                  preferred_element_type=jnp.float32)
          + b2_ref[...].astype(jnp.float32))
    h2 = jnp.maximum(h2, 0.0)

    # out + sigmoid, computed as w3_row @ h2^T so the result is a lane-dense
    # (1, TILE_B) row (unmasked stores) instead of a (TILE_B, 1) column.
    logits = lax.dot_general(
        w3_ref[...].astype(jnp.float32), h2, (((1,), (1,)), ((), ())),
        preferred_element_type=jnp.float32,
    ) + b3_ref[...].astype(jnp.float32)

    # Numerically stable sigmoid (no overflow for large |logits|). The kernel
    # is HBM-bound, so the extra VPU/EUP work is free filler; keep the exact
    # (non-approx) reciprocal for accuracy.
    pos = logits >= 0.0
    ez = jnp.exp(jnp.where(pos, -logits, logits))   # exp of non-positive arg
    num = jnp.where(pos, 1.0, ez)
    probs = num * pl.reciprocal(1.0 + ez, approx=False)

    o_ref[...] = probs[None]  # (1, 1, TILE_B)


def _vmem_budgets():
    """Per-generation budgets: (vmem_limit_bytes, x_stream_budget_bytes).

    Conservative defaults are safe on v7x (64 MiB VMEM per TC, 32 MiB scoped
    default). If the runtime reports a 128 MiB part (v5e/v6e), raise both so
    per-step DMA transfers stay in the ~85%-of-roofline regime.
    """
    cap = 0
    try:
        info = pltpu.get_tpu_info()
        cap = int(getattr(info, "vmem_capacity_bytes", 0) or 0)
    except Exception:
        cap = 0
    if cap >= 100 * 1024 * 1024:          # v5e / v6e: 128 MiB physical per TC
        return 64 * 1024 * 1024, 40 * 1024 * 1024
    return 32 * 1024 * 1024, 20 * 1024 * 1024   # v7x / unknown: stay safe


def _choose_tile_b(batch, in_features, itemsize,
                   x_stream_budget_bytes,
                   target_step_bytes=2 * 1024 * 1024,
                   min_grid_steps=4):
    """Batch tile size.

    (a) HBM: aim for ~target_step_bytes of *raw* x bytes per grid step so the
        ~0.35 us per-step overhead is amortized (1-4 MiB sweet spot).
    (b) VMEM: the x tile lives lane-padded in VMEM, i.e.
        tile_b * round_up(F, 128) * itemsize per buffer, double-buffered; keep
        that under x_stream_budget_bytes (weights/output accounted separately
        via the budget's headroom).
    (c) Megacore/pipeline: keep >= min_grid_steps grid steps for large batches
        so the "parallel" axis can shard across both v7x TensorCores.
    """
    f_pad = _round_up(in_features, 128)

    rows_hbm = target_step_bytes // max(1, in_features * itemsize)
    rows_vmem = x_stream_budget_bytes // max(1, 2 * f_pad * itemsize)

    tile = min(rows_hbm, rows_vmem)
    tile = max(128, (tile // 128) * 128)
    tile = min(tile, 64 * 1024)

    # (c): don't collapse moderate batches to a single grid step.
    per_step_cap = _round_up(pl.cdiv(batch, min_grid_steps), 128)
    tile = min(tile, per_step_cap)
    tile = max(tile, 128)
    return tile


def classification_model_forward(x, params, tile_b=None):
    """x: [B, input_size] (f32 or bf16). params: dict of weights/biases."""
    B, F = x.shape
    w1, b1 = params["w1"], params["b1"]   # (F, 32), (1, 32)
    w2, b2 = params["w2"], params["b2"]   # (32, 16), (1, 16)
    w3, b3 = params["w3"], params["b3"]   # (1, 16) [PyTorch layout], (1, 1)

    itemsize = jnp.dtype(x.dtype).itemsize
    vmem_limit_bytes, x_stream_budget = _vmem_budgets()
    tile_b = tile_b or _choose_tile_b(B, F, itemsize, x_stream_budget)

    b_pad = _round_up(B, tile_b)
    g = b_pad // tile_b
    x_pad = x if b_pad == B else jnp.pad(x, ((0, b_pad - B), (0, 0)))

    # Weights/biases: full-array blocks, constant block index -> VMEM-resident.
    def resident(shape):
        return pl.BlockSpec(shape, lambda i: tuple(0 for _ in shape))

    flops = 2 * b_pad * (F * 32 + 32 * 16 + 16 * 1)
    bytes_accessed = int(
        x_pad.size * itemsize
        + sum(a.size * jnp.dtype(a.dtype).itemsize
              for a in (w1, b1, w2, b2, w3, b3))
        + b_pad * 4)

    out = pl.pallas_call(
        _mlp_kernel,
        out_shape=jax.ShapeDtypeStruct((g, 1, tile_b), jnp.float32),
        grid=(g,),
        in_specs=[
            pl.BlockSpec((tile_b, F), lambda i: (i, 0)),  # x: streamed/pipelined
            resident(w1.shape), resident(b1.shape),
            resident(w2.shape), resident(b2.shape),
            resident(w3.shape), resident(b3.shape),
        ],
        out_specs=pl.BlockSpec((1, 1, tile_b), lambda i: (i, 0, 0)),
        compiler_params=pltpu.CompilerParams(
            dimension_semantics=("parallel",),       # megacore sharding on v7x
            vmem_limit_bytes=vmem_limit_bytes,
        ),
        cost_estimate=pl.CostEstimate(
            flops=flops, transcendentals=b_pad, bytes_accessed=bytes_accessed),
    )(x_pad, w1, b1, w2, b2, w3, b3)

    # (g, 1, tile_b) -> flat batch order -> (B, 1)
    return out.reshape(b_pad, 1)[:B]


def init_params(key, input_size, dtype=jnp.float32):
    """Mimics nn.Linear default init U(-1/sqrt(fan_in), +1/sqrt(fan_in)).

    fc1/fc2 weights stored [in, out] (transposed vs. PyTorch) for x @ W; the
    output-layer weight stays in PyTorch layout [1, 16] (used as a row in the
    kernel); biases are [1, out] rows (b3 is [1, 1])."""
    def linear_t(key, fan_in, fan_out):
        kw, kb = jax.random.split(key)
        bound = 1.0 / jnp.sqrt(jnp.float32(fan_in))
        w = jax.random.uniform(kw, (fan_in, fan_out), jnp.float32, -bound, bound)
        b = jax.random.uniform(kb, (1, fan_out), jnp.float32, -bound, bound)
        return w.astype(dtype), b.astype(dtype)

    k1, k2, k3 = jax.random.split(key, 3)
    w1, b1 = linear_t(k1, input_size, 32)
    w2, b2 = linear_t(k2, 32, 16)
    w3_io, b3 = linear_t(k3, 16, 1)              # (16, 1), (1, 1)
    return {"w1": w1, "b1": b1, "w2": w2, "b2": b2,
            "w3": w3_io.T, "b3": b3}             # w3 as (1, 16) row


def reference_forward(x, params):
    h1 = jnp.maximum(x @ params["w1"] + params["b1"], 0.0)
    h2 = jnp.maximum(h1 @ params["w2"] + params["b2"], 0.0)
    return jax.nn.sigmoid(h2 @ params["w3"].T + params["b3"])


if __name__ == "__main__":
    key = jax.random.PRNGKey(0)
    k_params, k_x = jax.random.split(key)

    batch, input_size = 8, 16
    params = init_params(k_params, input_size)
    x = jax.random.normal(k_x, (batch, input_size), jnp.float32)

    out = classification_model_forward(x, params)
    out = jax.block_until_ready(out)

    ref = reference_forward(x, params)
    assert out.shape == (batch, 1), out.shape
    assert jnp.allclose(out, ref, atol=1e-5, rtol=1e-5), "mismatch vs reference"

    print("KERNEL_OK")
</pallas_src>

<mosaic_0001>
module attributes {stable_mosaic.version = 11 : i64} {
  func.func @_mlp_kernel(%arg0: i32, %arg1: memref<128x16xf32, #tpu.memory_space<vmem>>, %arg2: memref<16x32xf32, #tpu.memory_space<vmem>>, %arg3: memref<1x32xf32, #tpu.memory_space<vmem>>, %arg4: memref<32x16xf32, #tpu.memory_space<vmem>>, %arg5: memref<1x16xf32, #tpu.memory_space<vmem>>, %arg6: memref<1x16xf32, #tpu.memory_space<vmem>>, %arg7: memref<1x1xf32, #tpu.memory_space<vmem>>, %arg8: memref<1x1x128xf32, #tpu.memory_space<vmem>>) attributes {dimension_semantics = [#tpu.dimension_semantics<parallel>], iteration_bounds = array<i64: 1>, scalar_prefetch = 0 : i64, scratch_operands = 0 : i64, tpu.core_type = #tpu.core_type<tc>, window_params = [{transform_indices = @transform_0, window_bounds = array<i64: 128, 16>}, {pipeline_mode = #tpu.pipeline_mode<synchronous>, transform_indices = @transform_1, window_bounds = array<i64: 16, 32>}, {pipeline_mode = #tpu.pipeline_mode<synchronous>, transform_indices = @transform_2, window_bounds = array<i64: 1, 32>}, {pipeline_mode = #tpu.pipeline_mode<synchronous>, transform_indices = @transform_3, window_bounds = array<i64: 32, 16>}, {pipeline_mode = #tpu.pipeline_mode<synchronous>, transform_indices = @transform_4, window_bounds = array<i64: 1, 16>}, {pipeline_mode = #tpu.pipeline_mode<synchronous>, transform_indices = @transform_5, window_bounds = array<i64: 1, 16>}, {pipeline_mode = #tpu.pipeline_mode<synchronous>, transform_indices = @transform_6, window_bounds = array<i64: 1, 1>}, {transform_indices = @transform_7, window_bounds = array<i64: 1, 1, 128>}]} {
    %c0 = arith.constant 0 : index
    %c0_0 = arith.constant 0 : index
    %0 = vector.load %arg1[%c0, %c0_0] : memref<128x16xf32, #tpu.memory_space<vmem>>, vector<128x16xf32>
    %c0_1 = arith.constant 0 : index
    %c0_2 = arith.constant 0 : index
    %1 = vector.load %arg2[%c0_1, %c0_2] : memref<16x32xf32, #tpu.memory_space<vmem>>, vector<16x32xf32>
    %cst = arith.constant dense<0.000000e+00> : vector<128x32xf32>
    %2 = tpu.matmul %0, %1, %cst {dimension_numbers = #tpu.dot_dimension_numbers<[1], [0], [0], [1], [0, 0, 1, 1], [], []>} : vector<128x16xf32>, vector<16x32xf32>, vector<128x32xf32> -> vector<128x32xf32>
    %c0_3 = arith.constant 0 : index
    %c0_4 = arith.constant 0 : index
    %3 = vector.load %arg3[%c0_3, %c0_4] : memref<1x32xf32, #tpu.memory_space<vmem>>, vector<1x32xf32>
    %4 = vector.broadcast %3 : vector<1x32xf32> to vector<128x32xf32>
    %5 = arith.addf %2, %4 : vector<128x32xf32>
    %cst_5 = arith.constant 0.000000e+00 : f32
    %6 = vector.broadcast %cst_5 : f32 to vector<128x32xf32>
    %7 = arith.maximumf %5, %6 : vector<128x32xf32>
    %c0_6 = arith.constant 0 : index
    %c0_7 = arith.constant 0 : index
    %8 = vector.load %arg4[%c0_6, %c0_7] : memref<32x16xf32, #tpu.memory_space<vmem>>, vector<32x16xf32>
    %cst_8 = arith.constant dense<0.000000e+00> : vector<128x16xf32>
    %9 = tpu.matmul %7, %8, %cst_8 {dimension_numbers = #tpu.dot_dimension_numbers<[1], [0], [0], [1], [0, 0, 1, 1], [], []>} : vector<128x32xf32>, vector<32x16xf32>, vector<128x16xf32> -> vector<128x16xf32>
    %c0_9 = arith.constant 0 : index
    %c0_10 = arith.constant 0 : index
    %10 = vector.load %arg5[%c0_9, %c0_10] : memref<1x16xf32, #tpu.memory_space<vmem>>, vector<1x16xf32>
    %11 = vector.broadcast %10 : vector<1x16xf32> to vector<128x16xf32>
    %12 = arith.addf %9, %11 : vector<128x16xf32>
    %cst_11 = arith.constant 0.000000e+00 : f32
    %13 = vector.broadcast %cst_11 : f32 to vector<128x16xf32>
    %14 = arith.maximumf %12, %13 : vector<128x16xf32>
    %c0_12 = arith.constant 0 : index
    %c0_13 = arith.constant 0 : index
    %15 = vector.load %arg6[%c0_12, %c0_13] : memref<1x16xf32, #tpu.memory_space<vmem>>, vector<1x16xf32>
    %cst_14 = arith.constant dense<0.000000e+00> : vector<1x128xf32>
    %16 = tpu.matmul %15, %14, %cst_14 {dimension_numbers = #tpu.dot_dimension_numbers<[1], [1], [0], [0], [0, 0, 1, 0], [], []>} : vector<1x16xf32>, vector<128x16xf32>, vector<1x128xf32> -> vector<1x128xf32>
    %c0_15 = arith.constant 0 : index
    %c0_16 = arith.constant 0 : index
    %17 = vector.load %arg7[%c0_15, %c0_16] : memref<1x1xf32, #tpu.memory_space<vmem>>, vector<1x1xf32>
    %18 = vector.broadcast %17 : vector<1x1xf32> to vector<1x128xf32>
    %19 = arith.addf %16, %18 : vector<1x128xf32>
    %cst_17 = arith.constant 0.000000e+00 : f32
    %20 = vector.broadcast %cst_17 : f32 to vector<1x128xf32>
    %21 = arith.cmpf oge, %19, %20 : vector<1x128xf32>
    %cst_18 = arith.constant 0.000000e+00 : f32
    %22 = vector.broadcast %cst_18 : f32 to vector<1x128xf32>
    %23 = arith.subf %22, %19 : vector<1x128xf32>
    %24 = arith.select %21, %23, %19 : vector<1x128xi1>, vector<1x128xf32>
    %25 = math.exp %24 : vector<1x128xf32>
    %cst_19 = arith.constant 1.000000e+00 : f32
    %26 = vector.broadcast %cst_19 : f32 to vector<1x128xf32>
    %27 = arith.select %21, %26, %25 : vector<1x128xi1>, vector<1x128xf32>
    %cst_20 = arith.constant 1.000000e+00 : f32
    %28 = vector.broadcast %cst_20 : f32 to vector<1x128xf32>
    %29 = arith.addf %28, %25 : vector<1x128xf32>
    %30 = tpu.reciprocal %29 : vector<1x128xf32> -> vector<1x128xf32>
    %31 = arith.mulf %27, %30 : vector<1x128xf32>
    %32 = vector.shape_cast %31 : vector<1x128xf32> to vector<1x1x128xf32>
    %c0_21 = arith.constant 0 : index
    %c0_22 = arith.constant 0 : index
    %c0_23 = arith.constant 0 : index
    %33 = vector.load %arg8[%c0_21, %c0_22, %c0_23] : memref<1x1x128xf32, #tpu.memory_space<vmem>>, vector<1x1x128xf32>
    tpu.vector_store %arg8[%c0_21, %c0_22, %c0_23], %32 {strides = array<i32>} : memref<1x1x128xf32, #tpu.memory_space<vmem>>, vector<1x1x128xf32>,
    return
  }
  func.func @transform_0(%arg0: i32) -> (i32, i32) {
    %c0_i32 = arith.constant 0 : i32
    %c0_i32_0 = arith.constant 0 : i32
    return %arg0, %c0_i32 : i32, i32
  }
  func.func @transform_1(%arg0: i32) -> (i32, i32) {
    %c0_i32 = arith.constant 0 : i32
    %c0_i32_0 = arith.constant 0 : i32
    %c0_i32_1 = arith.constant 0 : i32
    return %c0_i32, %c0_i32_0 : i32, i32
  }
  func.func @transform_2(%arg0: i32) -> (i32, i32) {
    %c0_i32 = arith.constant 0 : i32
    %c0_i32_0 = arith.constant 0 : i32
    %c0_i32_1 = arith.constant 0 : i32
    return %c0_i32, %c0_i32_0 : i32, i32
  }
  func.func @transform_3(%arg0: i32) -> (i32, i32) {
    %c0_i32 = arith.constant 0 : i32
    %c0_i32_0 = arith.constant 0 : i32
    %c0_i32_1 = arith.constant 0 : i32
    return %c0_i32, %c0_i32_0 : i32, i32
  }
  func.func @transform_4(%arg0: i32) -> (i32, i32) {
    %c0_i32 = arith.constant 0 : i32
    %c0_i32_0 = arith.constant 0 : i32
    %c0_i32_1 = arith.constant 0 : i32
    return %c0_i32, %c0_i32_0 : i32, i32
  }
  func.func @transform_5(%arg0: i32) -> (i32, i32) {
    %c0_i32 = arith.constant 0 : i32
    %c0_i32_0 = arith.constant 0 : i32
    %c0_i32_1 = arith.constant 0 : i32
    return %c0_i32, %c0_i32_0 : i32, i32
  }
  func.func @transform_6(%arg0: i32) -> (i32, i32) {
    %c0_i32 = arith.constant 0 : i32
    %c0_i32_0 = arith.constant 0 : i32
    %c0_i32_1 = arith.constant 0 : i32
    return %c0_i32, %c0_i32_0 : i32, i32
  }
  func.func @transform_7(%arg0: i32) -> (i32, i32, i32) {
    %c0_i32 = arith.constant 0 : i32
    %c0_i32_0 = arith.constant 0 : i32
    %c0_i32_1 = arith.constant 0 : i32
    return %arg0, %c0_i32, %c0_i32_0 : i32, i32, i32
  }
}

</mosaic_0001>

<llo_original>
// kernel: tpu_custom_call.1
$region0: #{tpu_custom_call.1}
  #allocation0 [shape = 'u32[]', space=smem, size = 0x4, offset = 0x4, fixed_abs, tag = 'smem constant byte address 0x4 - core index']
  #allocation1 [shape = 'u32[144,128]{1,0:T(1,128)}', space=vmem, size = 0x12000, scoped, tag = 'internal scratch']
  #allocation2 [shape = 'f32[1,1]{1,0:T(1,128)S(1)}', space=vmem, size = 0x200, scoped, tag = 'scoped memory for tpu_custom_call.1']
  %s0 = inlined_call_operand.vmem [shape: f32[128,16], index: 0, kind: input, shape index: {}]
  %s1 = inlined_call_operand.vmem [shape: f32[16,32], index: 1, kind: input, shape index: {}]
  %s2 = inlined_call_operand.vmem [shape: f32[1,32], index: 2, kind: input, shape index: {}]
  %s3 = inlined_call_operand.vmem [shape: f32[32,16], index: 3, kind: input, shape index: {}]
  %s4 = inlined_call_operand.vmem [shape: f32[1,16], index: 4, kind: input, shape index: {}]
  %s5 = inlined_call_operand.vmem [shape: f32[1,16], index: 5, kind: input, shape index: {}]
  %s6 = inlined_call_operand.<no memory space> [shape: f32[1,1], index: 6, kind: input, shape index: {}]
  %s7 = inlined_call_operand.hbm [shape: f32[1,1,128], index: 7, kind: output, shape index: {}]
  %s8 = sld [smem:[#allocation0]]
  $region38: #{tpu_custom_call.1} parent=0
    _
  %s10 = ssub.s32 1, %s8
  %s11 = scalar_select 0, %s10, %s8
  %v12 = vstv %s6
  %13 = vst [vmem:[#allocation2] sm:$0x1] %v12
  $region1: #{tpu_custom_call.1} parent=0
    #allocation3 [shape = 'u8[512]{0}', space=vmem, size = 0x400, scoped, tag = 'output window, operand 0, single buffered']
    #allocation4 [shape = 's32[1]{0}', space=sflag, size = 0x4, scoped, tag = 'scoped memory for tpu_custom_call.1']
    %14 = vsyncpa [#allocation4], 0
    // Predicated region
    $region2: #{tpu_custom_call.1} parent=1 // pred_check
      _
    $region3: #{tpu_custom_call.1} parent=1 // pred_check_branch
      %16 = sbr.rel (0) target = $region5
    $region4: #{tpu_custom_call.1} parent=1 // pred_region
      _
    $region5: #{tpu_custom_call.1} parent=1 // pred_fallthru
      _
    // Predicated region
    $region6: #{tpu_custom_call.1} parent=1 // pred_check
      _
    $region7: #{tpu_custom_call.1} parent=1 // pred_check_branch
      %18 = sbr.rel (0) target = $region9
    $region8: #{tpu_custom_call.1} parent=1 // pred_region
      _
    $region9: #{tpu_custom_call.1} parent=1 // pred_fallthru
      _
    // Predicated region
    $region10: #{tpu_custom_call.1} parent=1 // pred_check
      _
    $region11: #{tpu_custom_call.1} parent=1 // pred_check_branch
      %20 = sbr.rel (0) target = $region13
    $region12: #{tpu_custom_call.1} parent=1 // pred_region
      _
    $region13: #{tpu_custom_call.1} parent=1 // pred_fallthru
      _
    // Predicated region
    $region14: #{tpu_custom_call.1} parent=1 // pred_check
      _
    $region15: #{tpu_custom_call.1} parent=1 // pred_check_branch
      %22 = sbr.rel (0) target = $region17
    $region16: #{tpu_custom_call.1} parent=1 // pred_region
      _
    $region17: #{tpu_custom_call.1} parent=1 // pred_fallthru
      _
    // Predicated region
    $region18: #{tpu_custom_call.1} parent=1 // pred_check
      _
    $region19: #{tpu_custom_call.1} parent=1 // pred_check_branch
      %24 = sbr.rel (0) target = $region21
    $region20: #{tpu_custom_call.1} parent=1 // pred_region
      _
    $region21: #{tpu_custom_call.1} parent=1 // pred_fallthru
      _
    // Predicated region
    $region22: #{tpu_custom_call.1} parent=1 // pred_check
      _
    $region23: #{tpu_custom_call.1} parent=1 // pred_check_branch
      %26 = sbr.rel (0) target = $region25
    $region24: #{tpu_custom_call.1} parent=1 // pred_region
      _
    $region25: #{tpu_custom_call.1} parent=1 // pred_fallthru
      _
    // Predicated region
    $region26: #{tpu_custom_call.1} parent=1 // pred_check
      _
    $region27: #{tpu_custom_call.1} parent=1 // pred_check_branch
      %28 = sbr.rel (0) target = $region29
    $region28: #{tpu_custom_call.1} parent=1 // pred_region
      _
    $region29: #{tpu_custom_call.1} parent=1 // pred_fallthru
      _
    %v29 = vld [vmem:[%s0] sm:$0xff]
    %v30 = vld [vmem:[%s0 + $0x8] sm:$0xff]
    %v31 = vld [vmem:[%s0 + $0x10] sm:$0xff]
    %v32 = vld [vmem:[%s0 + $0x18] sm:$0xff]
    %v33 = vld [vmem:[%s0 + $0x20] sm:$0xff]
    %v34 = vld [vmem:[%s0 + $0x28] sm:$0xff]
    %v35 = vld [vmem:[%s0 + $0x30] sm:$0xff]
    %v36 = vld [vmem:[%s0 + $0x38] sm:$0xff]
    %v37 = vld [vmem:[%s0 + $0x40] sm:$0xff]
    %v38 = vld [vmem:[%s0 + $0x48] sm:$0xff]
    %v39 = vld [vmem:[%s0 + $0x50] sm:$0xff]
    %v40 = vld [vmem:[%s0 + $0x58] sm:$0xff]
    %v41 = vld [vmem:[%s0 + $0x60] sm:$0xff]
    %v42 = vld [vmem:[%s0 + $0x68] sm:$0xff]
    %v43 = vld [vmem:[%s0 + $0x70] sm:$0xff]
    %v44 = vld [vmem:[%s0 + $0x78] sm:$0xff]
    %v45 = vld [vmem:[%s1] sm:$0xff]
    %v46 = vld [vmem:[%s1 + $0x8] sm:$0xff]
    %v47 = vld [vmem:[%s2] sm:$0x1]
    %v49 = vlaneseq
    %v50 = vshrl.u32 %v49, 7
    %v51 = vsub.s32 0, %v50
    %v52 = vrot.slane %v47, %v51
    %vm54 = vcmask 130048
    %v56 = vsel %vm54, %v29, 0
    %v59 = vsel %vm54, %v30, 0
    %v62 = vsel %vm54, %v31, 0
    %v65 = vsel %vm54, %v32, 0
    %v68 = vsel %vm54, %v33, 0
    %v71 = vsel %vm54, %v34, 0
    %v74 = vsel %vm54, %v35, 0
    %v77 = vsel %vm54, %v36, 0
    %v80 = vsel %vm54, %v37, 0
    %v83 = vsel %vm54, %v38, 0
    %v86 = vsel %vm54, %v39, 0
    %v89 = vsel %vm54, %v40, 0
    %v92 = vsel %vm54, %v41, 0
    %v95 = vsel %vm54, %v42, 0
    %v98 = vsel %vm54, %v43, 0
    %v101 = vsel %vm54, %v44, 0
    %103 = vmatprep.subr.mxu0 0.0
    %104 = vmatpush1.msra.mxu0 %v45
    %105 = vmatprep.subr.mxu0 0.0
    %106 = vmatpush1.msra.mxu0 %v46
    %107 = vmatprep.subr.mxu0 0.0
    %108 = vmatpush1.msra.mxu0 0.0
    %109 = vmatprep.subr.mxu0 0.0
    %110 = vmatpush1.msra.mxu0 0.0
    %111 = vmatprep.subr.mxu0 0.0
    %112 = vmatpush1.msra.mxu0 0.0
    %113 = vmatprep.subr.mxu0 0.0
    %114 = vmatpush1.msra.mxu0 0.0
    %115 = vmatprep.subr.mxu0 0.0
    %116 = vmatpush1.msra.mxu0 0.0
    %117 = vmatprep.subr.mxu0 0.0
    %118 = vmatpush1.msra.mxu0 0.0
    %119 = vmatprep.subr.mxu0 0.0
    %120 = vmatpush1.msra.mxu0 0.0
    %121 = vmatprep.subr.mxu0 0.0
    %122 = vmatpush1.msra.mxu0 0.0
    %123 = vmatprep.subr.mxu0 0.0
    %124 = vmatpush1.msra.mxu0 0.0
    %125 = vmatprep.subr.mxu0 0.0
    %126 = vmatpush1.msra.mxu0 0.0
    %127 = vmatprep.subr.mxu0 0.0
    %128 = vmatpush1.msra.mxu0 0.0
    %129 = vmatprep.subr.mxu0 0.0
    %130 = vmatpush1.msra.mxu0 0.0
    %131 = vmatprep.subr.mxu0 0.0
    %132 = vmatpush1.msra.mxu0 0.0
    %133 = vmatprep.subr.mxu0 0.0
    %134 = vmatpush1.msra.mxu0 0.0
    %135 = vmatprep.subr.mxu0 0.0
    %136 = vmatpush1.msra.mxu0 0.0
    %137 = vmatprep.subr.mxu0 0.0
    %138 = vmatpush1.msra.mxu0 0.0
    %139 = vmatprep.subr.mxu0 0.0
    %140 = vmatpush1.msra.mxu0 0.0
    %141 = vmatprep.subr.mxu0 0.0
    %142 = vmatpush1.msra.mxu0 0.0
    %143 = vmatprep.subr.mxu0 0.0
    %144 = vmatpush1.msra.mxu0 0.0
    %145 = vmatprep.subr.mxu0 0.0
    %146 = vmatpush1.msra.mxu0 0.0
    %147 = vmatprep.subr.mxu0 0.0
    %148 = vmatpush1.msra.mxu0 0.0
    %149 = vmatprep.subr.mxu0 0.0
    %150 = vmatpush1.msra.mxu0 0.0
    %151 = vmatprep.subr.mxu0 0.0
    %152 = vmatpush1.msra.mxu0 0.0
    %153 = vmatprep.subr.mxu0 0.0
    %154 = vmatpush1.msra.mxu0 0.0
    %155 = vmatprep.subr.mxu0 0.0
    %156 = vmatpush1.msra.mxu0 0.0
    %157 = vmatprep.subr.mxu0 0.0
    %158 = vmatpush1.msra.mxu0 0.0
    %159 = vmatprep.subr.mxu0 0.0
    %160 = vmatpush1.msra.mxu0 0.0
    %161 = vmatprep.subr.mxu0 0.0
    %162 = vmatpush1.msra.mxu0 0.0
    %163 = vmatprep.subr.mxu0 0.0
    %164 = vmatpush1.msra.mxu0 0.0
    %165 = vmatprep.subr.mxu0 0.0
    %166 = vmatpush1.msra.mxu0 0.0
    %167 = vmatprep.mubr.f32.mxu0 0.0
    %168 = vmatmul.mubr.f32.gmra.mrb[0].mxu0 %v56
    %v169 = vpop.f32.mrb[0].mxu0
    %v170 = vadd.f32 %v52, %v169
    %v171 = vpop.f32.mrb[0].mxu0
    %172 = vmatprep.mubr.f32.mxu0 0.0
    %173 = vmatmul.mubr.f32.gmra.mrb[0].mxu0 %v59
    %v174 = vpop.f32.mrb[0].mxu0
    %v175 = vadd.f32 %v52, %v174
    %v176 = vpop.f32.mrb[0].mxu0
    %177 = vmatprep.mubr.f32.mxu0 0.0
    %178 = vmatmul.mubr.f32.gmra.mrb[0].mxu0 %v62
    %v179 = vpop.f32.mrb[0].mxu0
    %v180 = vadd.f32 %v52, %v179
    %v181 = vpop.f32.mrb[0].mxu0
    %182 = vmatprep.mubr.f32.mxu0 0.0
    %183 = vmatmul.mubr.f32.gmra.mrb[0].mxu0 %v65
    %v184 = vpop.f32.mrb[0].mxu0
    %v185 = vadd.f32 %v52, %v184
    %v186 = vpop.f32.mrb[0].mxu0
    %187 = vmatprep.mubr.f32.mxu0 0.0
    %188 = vmatmul.mubr.f32.gmra.mrb[0].mxu0 %v68
    %v189 = vpop.f32.mrb[0].mxu0
    %v190 = vadd.f32 %v52, %v189
    %v191 = vpop.f32.mrb[0].mxu0
    %192 = vmatprep.mubr.f32.mxu0 0.0
    %193 = vmatmul.mubr.f32.gmra.mrb[0].mxu0 %v71
    %v194 = vpop.f32.mrb[0].mxu0
    %v195 = vadd.f32 %v52, %v194
    %v196 = vpop.f32.mrb[0].mxu0
    %197 = vmatprep.mubr.f32.mxu0 0.0
    %198 = vmatmul.mubr.f32.gmra.mrb[0].mxu0 %v74
    %v199 = vpop.f32.mrb[0].mxu0
    %v200 = vadd.f32 %v52, %v199
    %v201 = vpop.f32.mrb[0].mxu0
    %202 = vmatprep.mubr.f32.mxu0 0.0
    %203 = vmatmul.mubr.f32.gmra.mrb[0].mxu0 %v77
    %v204 = vpop.f32.mrb[0].mxu0
    %v205 = vadd.f32 %v52, %v204
    %v206 = vpop.f32.mrb[0].mxu0
    %207 = vmatprep.mubr.f32.mxu0 0.0
    %208 = vmatmul.mubr.f32.gmra.mrb[0].mxu0 %v80
    %v209 = vpop.f32.mrb[0].mxu0
    %v210 = vadd.f32 %v52, %v209
    %v211 = vpop.f32.mrb[0].mxu0
    %212 = vmatprep.mubr.f32.mxu0 0.0
    %213 = vmatmul.mubr.f32.gmra.mrb[0].mxu0 %v83
    %v214 = vpop.f32.mrb[0].mxu0
    %v215 = vadd.f32 %v52, %v214
    %v216 = vpop.f32.mrb[0].mxu0
    %217 = vmatprep.mubr.f32.mxu0 0.0
    %218 = vmatmul.mubr.f32.gmra.mrb[0].mxu0 %v86
    %v219 = vpop.f32.mrb[0].mxu0
    %v220 = vadd.f32 %v52, %v219
    %v221 = vpop.f32.mrb[0].mxu0
    %222 = vmatprep.mubr.f32.mxu0 0.0
    %223 = vmatmul.mubr.f32.gmra.mrb[0].mxu0 %v89
    %v224 = vpop.f32.mrb[0].mxu0
    %v225 = vadd.f32 %v52, %v224
    %v226 = vpop.f32.mrb[0].mxu0
    %227 = vmatprep.mubr.f32.mxu0 0.0
    %228 = vmatmul.mubr.f32.gmra.mrb[0].mxu0 %v92
    %v229 = vpop.f32.mrb[0].mxu0
    %v230 = vadd.f32 %v52, %v229
    %v231 = vpop.f32.mrb[0].mxu0
    %232 = vmatprep.mubr.f32.mxu0 0.0
    %233 = vmatmul.mubr.f32.gmra.mrb[0].mxu0 %v95
    %v234 = vpop.f32.mrb[0].mxu0
    %v235 = vadd.f32 %v52, %v234
    %v236 = vpop.f32.mrb[0].mxu0
    %237 = vmatprep.mubr.f32.mxu0 0.0
    %238 = vmatmul.mubr.f32.gmra.mrb[0].mxu0 %v98
    %v239 = vpop.f32.mrb[0].mxu0
    %v240 = vadd.f32 %v52, %v239
    %v241 = vpop.f32.mrb[0].mxu0
    %242 = vmatprep.mubr.f32.mxu0 0.0
    %243 = vmatmul.mubr.f32.gmra.mrb[0].mxu0 %v101
    %v244 = vpop.f32.mrb[0].mxu0
    %v245 = vadd.f32 %v52, %v244
    %v246 = vpop.f32.mrb[0].mxu0
    %247 = vdwg.mxu0
    %v248 = vmax.f32 %v170, 0.0
    %v249 = vmax.f32 %v175, 0.0
    %v250 = vmax.f32 %v180, 0.0
    %v251 = vmax.f32 %v185, 0.0
    %v252 = vmax.f32 %v190, 0.0
    %v253 = vmax.f32 %v195, 0.0
    %v254 = vmax.f32 %v200, 0.0
    %v255 = vmax.f32 %v205, 0.0
    %v256 = vmax.f32 %v210, 0.0
    %v257 = vmax.f32 %v215, 0.0
    %v258 = vmax.f32 %v220, 0.0
    %v259 = vmax.f32 %v225, 0.0
    %v260 = vmax.f32 %v230, 0.0
    %v261 = vmax.f32 %v235, 0.0
    %v262 = vmax.f32 %v240, 0.0
    %v263 = vmax.f32 %v245, 0.0
    %v264 = vld [vmem:[%s3] sm:$0xff]
    %v265 = vld [vmem:[%s3 + $0x8] sm:$0xff]
    %v266 = vld [vmem:[%s3 + $0x10] sm:$0xff]
    %v267 = vld [vmem:[%s3 + $0x18] sm:$0xff]
    %v268 = vld [vmem:[%s4] sm:$0x1]
    %v270 = vlaneseq
    %v271 = vshrl.u32 %v270, 7
    %v272 = vsub.s32 0, %v271
    %v273 = vrot.slane %v268, %v272
    %vm275 = vcmask 261120
    %v277 = vsel %vm275, %v248, 0
    %v280 = vsel %vm275, %v249, 0
    %v283 = vsel %vm275, %v250, 0
    %v286 = vsel %vm275, %v251, 0
    %v289 = vsel %vm275, %v252, 0
    %v292 = vsel %vm275, %v253, 0
    %v295 = vsel %vm275, %v254, 0
    %v298 = vsel %vm275, %v255, 0
    %v301 = vsel %vm275, %v256, 0
    %v304 = vsel %vm275, %v257, 0
    %v307 = vsel %vm275, %v258, 0
    %v310 = vsel %vm275, %v259, 0
    %v313 = vsel %vm275, %v260, 0
    %v316 = vsel %vm275, %v261, 0
    %v319 = vsel %vm275, %v262, 0
    %v322 = vsel %vm275, %v263, 0
    %324 = vmatprep.subr.mxu0 0.0
    %325 = vmatpush1.msra.mxu0 %v264
    %326 = vmatprep.subr.mxu0 0.0
    %327 = vmatpush1.msra.mxu0 %v265
    %328 = vmatprep.subr.mxu0 0.0
    %329 = vmatpush1.msra.mxu0 %v266
    %330 = vmatprep.subr.mxu0 0.0
    %331 = vmatpush1.msra.mxu0 %v267
    %332 = vmatprep.subr.mxu0 0.0
    %333 = vmatpush1.msra.mxu0 0.0
    %334 = vmatprep.subr.mxu0 0.0
    %335 = vmatpush1.msra.mxu0 0.0
    %336 = vmatprep.subr.mxu0 0.0
    %337 = vmatpush1.msra.mxu0 0.0
    %338 = vmatprep.subr.mxu0 0.0
    %339 = vmatpush1.msra.mxu0 0.0
    %340 = vmatprep.subr.mxu0 0.0
    %341 = vmatpush1.msra.mxu0 0.0
    %342 = vmatprep.subr.mxu0 0.0
    %343 = vmatpush1.msra.mxu0 0.0
    %344 = vmatprep.subr.mxu0 0.0
    %345 = vmatpush1.msra.mxu0 0.0
    %346 = vmatprep.subr.mxu0 0.0
    %347 = vmatpush1.msra.mxu0 0.0
    %348 = vmatprep.subr.mxu0 0.0
    %349 = vmatpush1.msra.mxu0 0.0
    %350 = vmatprep.subr.mxu0 0.0
    %351 = vmatpush1.msra.mxu0 0.0
    %352 = vmatprep.subr.mxu0 0.0
    %353 = vmatpush1.msra.mxu0 0.0
    %354 = vmatprep.subr.mxu0 0.0
    %355 = vmatpush1.msra.mxu0 0.0
    %356 = vmatprep.subr.mxu0 0.0
    %357 = vmatpush1.msra.mxu0 0.0
    %358 = vmatprep.subr.mxu0 0.0
    %359 = vmatpush1.msra.mxu0 0.0
    %360 = vmatprep.subr.mxu0 0.0
    %361 = vmatpush1.msra.mxu0 0.0
    %362 = vmatprep.subr.mxu0 0.0
    %363 = vmatpush1.msra.mxu0 0.0
    %364 = vmatprep.subr.mxu0 0.0
    %365 = vmatpush1.msra.mxu0 0.0
    %366 = vmatprep.subr.mxu0 0.0
    %367 = vmatpush1.msra.mxu0 0.0
    %368 = vmatprep.subr.mxu0 0.0
    %369 = vmatpush1.msra.mxu0 0.0
    %370 = vmatprep.subr.mxu0 0.0
    %371 = vmatpush1.msra.mxu0 0.0
    %372 = vmatprep.subr.mxu0 0.0
    %373 = vmatpush1.msra.mxu0 0.0
    %374 = vmatprep.subr.mxu0 0.0
    %375 = vmatpush1.msra.mxu0 0.0
    %376 = vmatprep.subr.mxu0 0.0
    %377 = vmatpush1.msra.mxu0 0.0
    %378 = vmatprep.subr.mxu0 0.0
    %379 = vmatpush1.msra.mxu0 0.0
    %380 = vmatprep.subr.mxu0 0.0
    %381 = vmatpush1.msra.mxu0 0.0
    %382 = vmatprep.subr.mxu0 0.0
    %383 = vmatpush1.msra.mxu0 0.0
    %384 = vmatprep.subr.mxu0 0.0
    %385 = vmatpush1.msra.mxu0 0.0
    %386 = vmatprep.subr.mxu0 0.0
    %387 = vmatpush1.msra.mxu0 0.0
    %388 = vmatprep.mubr.f32.mxu0 0.0
    %389 = vmatmul.mubr.f32.gmra.mrb[0].mxu0 %v277
    %v390 = vpop.f32.mrb[0].mxu0
    %v391 = vadd.f32 %v273, %v390
    %v392 = vpop.f32.mrb[0].mxu0
    %393 = vmatprep.mubr.f32.mxu0 0.0
    %394 = vmatmul.mubr.f32.gmra.mrb[0].mxu0 %v280
    %v395 = vpop.f32.mrb[0].mxu0
    %v396 = vadd.f32 %v273, %v395
    %v397 = vpop.f32.mrb[0].mxu0
    %398 = vmatprep.mubr.f32.mxu0 0.0
    %399 = vmatmul.mubr.f32.gmra.mrb[0].mxu0 %v283
    %v400 = vpop.f32.mrb[0].mxu0
    %v401 = vadd.f32 %v273, %v400
    %v402 = vpop.f32.mrb[0].mxu0
    %403 = vmatprep.mubr.f32.mxu0 0.0
    %404 = vmatmul.mubr.f32.gmra.mrb[0].mxu0 %v286
    %v405 = vpop.f32.mrb[0].mxu0
    %v406 = vadd.f32 %v273, %v405
    %v407 = vpop.f32.mrb[0].mxu0
    %408 = vmatprep.mubr.f32.mxu0 0.0
    %409 = vmatmul.mubr.f32.gmra.mrb[0].mxu0 %v289
    %v410 = vpop.f32.mrb[0].mxu0
    %v411 = vadd.f32 %v273, %v410
    %v412 = vpop.f32.mrb[0].mxu0
    %413 = vmatprep.mubr.f32.mxu0 0.0
    %414 = vmatmul.mubr.f32.gmra.mrb[0].mxu0 %v292
    %v415 = vpop.f32.mrb[0].mxu0
    %v416 = vadd.f32 %v273, %v415
    %v417 = vpop.f32.mrb[0].mxu0
    %418 = vmatprep.mubr.f32.mxu0 0.0
    %419 = vmatmul.mubr.f32.gmra.mrb[0].mxu0 %v295
    %v420 = vpop.f32.mrb[0].mxu0
    %v421 = vadd.f32 %v273, %v420
    %v422 = vpop.f32.mrb[0].mxu0
    %423 = vmatprep.mubr.f32.mxu0 0.0
    %424 = vmatmul.mubr.f32.gmra.mrb[0].mxu0 %v298
    %v425 = vpop.f32.mrb[0].mxu0
    %v426 = vadd.f32 %v273, %v425
    %v427 = vpop.f32.mrb[0].mxu0
    %428 = vmatprep.mubr.f32.mxu0 0.0
    %429 = vmatmul.mubr.f32.gmra.mrb[0].mxu0 %v301
    %v430 = vpop.f32.mrb[0].mxu0
    %v431 = vadd.f32 %v273, %v430
    %v432 = vpop.f32.mrb[0].mxu0
    %433 = vmatprep.mubr.f32.mxu0 0.0
    %434 = vmatmul.mubr.f32.gmra.mrb[0].mxu0 %v304
    %v435 = vpop.f32.mrb[0].mxu0
    %v436 = vadd.f32 %v273, %v435
    %v437 = vpop.f32.mrb[0].mxu0
    %438 = vmatprep.mubr.f32.mxu0 0.0
    %439 = vmatmul.mubr.f32.gmra.mrb[0].mxu0 %v307
    %v440 = vpop.f32.mrb[0].mxu0
    %v441 = vadd.f32 %v273, %v440
    %v442 = vpop.f32.mrb[0].mxu0
    %443 = vmatprep.mubr.f32.mxu0 0.0
    %444 = vmatmul.mubr.f32.gmra.mrb[0].mxu0 %v310
    %v445 = vpop.f32.mrb[0].mxu0
    %v446 = vadd.f32 %v273, %v445
    %v447 = vpop.f32.mrb[0].mxu0
    %448 = vmatprep.mubr.f32.mxu0 0.0
    %449 = vmatmul.mubr.f32.gmra.mrb[0].mxu0 %v313
    %v450 = vpop.f32.mrb[0].mxu0
    %v451 = vadd.f32 %v273, %v450
    %v452 = vpop.f32.mrb[0].mxu0
    %453 = vmatprep.mubr.f32.mxu0 0.0
    %454 = vmatmul.mubr.f32.gmra.mrb[0].mxu0 %v316
    %v455 = vpop.f32.mrb[0].mxu0
    %v456 = vadd.f32 %v273, %v455
    %v457 = vpop.f32.mrb[0].mxu0
    %458 = vmatprep.mubr.f32.mxu0 0.0
    %459 = vmatmul.mubr.f32.gmra.mrb[0].mxu0 %v319
    %v460 = vpop.f32.mrb[0].mxu0
    %v461 = vadd.f32 %v273, %v460
    %v462 = vpop.f32.mrb[0].mxu0
    %463 = vmatprep.mubr.f32.mxu0 0.0
    %464 = vmatmul.mubr.f32.gmra.mrb[0].mxu0 %v322
    %v465 = vpop.f32.mrb[0].mxu0
    %v466 = vadd.f32 %v273, %v465
    %v467 = vpop.f32.mrb[0].mxu0
    %468 = vdwg.mxu0
    %v469 = vmax.f32 %v391, 0.0
    %v470 = vmax.f32 %v396, 0.0
    %v471 = vmax.f32 %v401, 0.0
    %v472 = vmax.f32 %v406, 0.0
    %v473 = vmax.f32 %v411, 0.0
    %v474 = vmax.f32 %v416, 0.0
    %v475 = vmax.f32 %v421, 0.0
    %v476 = vmax.f32 %v426, 0.0
    %v477 = vmax.f32 %v431, 0.0
    %v478 = vmax.f32 %v436, 0.0
    %v479 = vmax.f32 %v441, 0.0
    %v480 = vmax.f32 %v446, 0.0
    %v481 = vmax.f32 %v451, 0.0
    %v482 = vmax.f32 %v456, 0.0
    %v483 = vmax.f32 %v461, 0.0
    %v484 = vmax.f32 %v466, 0.0
    %v485 = vld [vmem:[%s5] sm:$0x1]
    %v486 = vld [vmem:[#allocation2] sm:$0x1]
    %488 = vset.pattern.permute.xlu0 0
    %489 = vperm.xlu0 %488, %v486
    %v490 = vpop.permute.xlu0 %489
    %v492 = vlaneseq
    %v493 = vshrl.u32 %v492, 7
    %v494 = vsub.s32 0, %v493
    %v495 = vrot.slane %v490, %v494
    %v497 = vsel %vm54, %v485, 0
    %v500 = vsel %vm54, %v469, 0
    %v503 = vsel %vm54, %v470, 0
    %v506 = vsel %vm54, %v471, 0
    %v509 = vsel %vm54, %v472, 0
    %v512 = vsel %vm54, %v473, 0
    %v515 = vsel %vm54, %v474, 0
    %v518 = vsel %vm54, %v475, 0
    %v521 = vsel %vm54, %v476, 0
    %v524 = vsel %vm54, %v477, 0
    %v527 = vsel %vm54, %v478, 0
    %v530 = vsel %vm54, %v479, 0
    %v533 = vsel %vm54, %v480, 0
    %v536 = vsel %vm54, %v481, 0
    %v539 = vsel %vm54, %v482, 0
    %v542 = vsel %vm54, %v483, 0
    %v545 = vsel %vm54, %v484, 0
    %547 = vmatprep.subr.mxu0 0.0
    %548 = vmatpush1.xpose.msra.mxu0 %v500
    %549 = vmatprep.subr.mxu0 0.0
    %550 = vmatpush1.xpose.msra.mxu0 %v503
    %551 = vmatprep.subr.mxu0 0.0
    %552 = vmatpush1.xpose.msra.mxu0 %v506
    %553 = vmatprep.subr.mxu0 0.0
    %554 = vmatpush1.xpose.msra.mxu0 %v509
    %555 = vmatprep.subr.mxu0 0.0
    %556 = vmatpush1.xpose.msra.mxu0 %v512
    %557 = vmatprep.subr.mxu0 0.0
    %558 = vmatpush1.xpose.msra.mxu0 %v515
    %559 = vmatprep.subr.mxu0 0.0
    %560 = vmatpush1.xpose.msra.mxu0 %v518
    %561 = vmatprep.subr.mxu0 0.0
    %562 = vmatpush1.xpose.msra.mxu0 %v521
    %563 = vmatprep.subr.mxu0 0.0
    %564 = vmatpush1.xpose.msra.mxu0 %v524
    %565 = vmatprep.subr.mxu0 0.0
    %566 = vmatpush1.xpose.msra.mxu0 %v527
    %567 = vmatprep.subr.mxu0 0.0
    %568 = vmatpush1.xpose.msra.mxu0 %v530
    %569 = vmatprep.subr.mxu0 0.0
    %570 = vmatpush1.xpose.msra.mxu0 %v533
    %571 = vmatprep.subr.mxu0 0.0
    %572 = vmatpush1.xpose.msra.mxu0 %v536
    %573 = vmatprep.subr.mxu0 0.0
    %574 = vmatpush1.xpose.msra.mxu0 %v539
    %575 = vmatprep.subr.mxu0 0.0
    %576 = vmatpush1.xpose.msra.mxu0 %v542
    %577 = vmatprep.subr.mxu0 0.0
    %578 = vmatpush1.xpose.msra.mxu0 %v545
    %579 = vmatprep.subr.mxu0 0.0
    %580 = vmatpush1.xpose.msra.mxu0 0.0
    %581 = vmatprep.subr.mxu0 0.0
    %582 = vmatpush1.xpose.msra.mxu0 0.0
    %583 = vmatprep.subr.mxu0 0.0
    %584 = vmatpush1.xpose.msra.mxu0 0.0
    %585 = vmatprep.subr.mxu0 0.0
    %586 = vmatpush1.xpose.msra.mxu0 0.0
    %587 = vmatprep.subr.mxu0 0.0
    %588 = vmatpush1.xpose.msra.mxu0 0.0
    %589 = vmatprep.subr.mxu0 0.0
    %590 = vmatpush1.xpose.msra.mxu0 0.0
    %591 = vmatprep.subr.mxu0 0.0
    %592 = vmatpush1.xpose.msra.mxu0 0.0
    %593 = vmatprep.subr.mxu0 0.0
    %594 = vmatpush1.xpose.msra.mxu0 0.0
    %595 = vmatprep.subr.mxu0 0.0
    %596 = vmatpush1.xpose.msra.mxu0 0.0
    %597 = vmatprep.subr.mxu0 0.0
    %598 = vmatpush1.xpose.msra.mxu0 0.0
    %599 = vmatprep.subr.mxu0 0.0
    %600 = vmatpush1.xpose.msra.mxu0 0.0
    %601 = vmatprep.subr.mxu0 0.0
    %602 = vmatpush1.xpose.msra.mxu0 0.0
    %603 = vmatprep.subr.mxu0 0.0
    %604 = vmatpush1.xpose.msra.mxu0 0.0
    %605 = vmatprep.subr.mxu0 0.0
    %606 = vmatpush1.xpose.msra.mxu0 0.0
    %607 = vmatprep.subr.mxu0 0.0
    %608 = vmatpush1.xpose.msra.mxu0 0.0
    %609 = vmatprep.subr.mxu0 0.0
    %610 = vmatpush1.xpose.msra.mxu0 0.0
    %611 = vmatprep.mubr.f32.mxu0 0.0
    %612 = vmatmul.mubr.f32.gmra.mrb[0].mxu0 %v497
    %v613 = vpop.f32.mrb[0].mxu0
    %v614 = vadd.f32 %v495, %v613
    %v615 = vpop.f32.mrb[0].mxu0
    %616 = vdwg.mxu0
    %vm617 = vcmp.ge.f32.partialorder %v614, 0.0
    %v618 = vsub.f32 0.0, %v614
    %v619 = vsel %vm617, %v618, %v614
    %v620 = vmul.f32 %v619, 1.442695
    %v621 = vpow.pop %v620
    %v622 = vsel %vm617, 1.0, %v621
    %v623 = vadd.f32 %v621, 1.0
    %v624 = vrcp.pop %v623
    %v625 = vmul.f32 %v622, %v624
    %626 = vst [vmem:[#allocation3] sm:$0x1] %v625
    // Predicated region
    $region30: #{tpu_custom_call.1} parent=1 // pred_check
      _
    $region31: #{tpu_custom_call.1} parent=1 // pred_check_branch
      %628 = sbr.rel (0) target = $region33
    $region32: #{tpu_custom_call.1} parent=1 // pred_region
      %s630 = ssub.s32 16, 16
      %631 = vsyncadd [#allocation4], %s630
      %s633 = sshll.u32 [#allocation3], 4
      %s634 = int_to_ptr.vmem [resolvable:$true] %s633
      %636 = dma.vmem_to_hbm [thread:$0]  %s634, 16, %s7, [#allocation4]
    $region33: #{tpu_custom_call.1} parent=1 // pred_fallthru
      _
    // Predicated region
    $region34: #{tpu_custom_call.1} parent=1 // pred_check
      _
    $region35: #{tpu_custom_call.1} parent=1 // pred_check_branch
      %638 = sbr.rel (0) target = $region37
    $region36: #{tpu_custom_call.1} parent=1 // pred_region
      %639 = dma.done [#allocation4], 16
    $region37: #{tpu_custom_call.1} parent=1 // pred_fallthru
      _
    %640 = vsyncpa [#allocation4], 1

</llo_original>
